<compile_context>
chip_gen: v7x
topology: tpu7x:2x2x1
jax: 0.10.0
libtpu: 0.0.40
codegen_flags: <defaults>
</compile_context>

<pallas_src>
import jax
import jax.numpy as jnp
from jax.experimental import pallas as pl
from jax.experimental.pallas import tpu as pltpu

HID1 = 500          # PyTorch module's first hidden size
HID1_PAD = 512      # padded to a multiple of 128 (exact math: zero cols/rows)
HID2 = 128
LANE = 128


def _round_up(x, m):
    return ((x + m - 1) // m) * m


def actor_kernel(obs_ref, w1_ref, b1_ref, w2_ref, b2_ref, w3_ref, b3_ref, out_ref):
    # FC1 + ReLU (bf16 operands, f32 MXU accumulation, f32 epilogue)
    x = obs_ref[...].astype(jnp.bfloat16)
    h1 = jnp.dot(x, w1_ref[...], preferred_element_type=jnp.float32)
    h1 = jnp.maximum(h1 + b1_ref[...], 0.0)
    # FC2 + ReLU
    h2 = jnp.dot(h1.astype(jnp.bfloat16), w2_ref[...], preferred_element_type=jnp.float32)
    h2 = jnp.maximum(h2 + b2_ref[...], 0.0)
    # FC3 + tanh (output width padded to 128 lanes; padded cols are tanh(0) = 0)
    h3 = jnp.dot(h2.astype(jnp.bfloat16), w3_ref[...], preferred_element_type=jnp.float32)
    out_ref[...] = jnp.tanh(h3 + b3_ref[...])


def _vmem_capacity_bytes():
    """Trace-time VMEM capacity query; conservative (v7x-sized) default if unavailable."""
    try:
        return int(pltpu.get_tpu_info().vmem_capacity_bytes)
    except Exception:
        return 64 * 1024 * 1024


def actor_forward(obs, prepared_params, dim_action, *, block_b=None):
    """obs: (B, dim_observation) f32 -> (B, dim_action) f32 in [-1, 1].

    prepared_params: output of prepare_params() (bf16 weights, padded feature dims).
    """
    w1, b1, w2, b2, w3, b3 = prepared_params
    B, dim_obs_in = obs.shape
    dim_obs_p = w1.shape[0]       # possibly padded contraction dim of FC1
    act_pad = w3.shape[1]         # dim_action padded up to a multiple of 128

    # Generation-aware batch tile / VMEM limit.
    vmem_cap = _vmem_capacity_bytes()
    big_vmem = vmem_cap >= 100 * 1024 * 1024          # v5e / v6e (128 MiB)
    if block_b is None:
        block_b = 2048 if big_vmem else 1024          # smaller tiles on v7x (64 MiB)
    vmem_limit = (96 if big_vmem else 48) * 1024 * 1024

    # Batch tiling: TB multiple of 16 (bf16 sublane packing); >= 2 grid steps when the
    # batch is big enough (v7x megacore); bounded padding waste (<= 15 rows per tile).
    B16 = _round_up(B, 16)
    if B16 <= 32:
        TB = B16
    else:
        nb_target = max(2, pl.cdiv(B16, block_b))
        TB = _round_up(pl.cdiv(B16, nb_target), 16)
    B_pad = _round_up(B, TB)
    nb = B_pad // TB

    pad_rows = B_pad - B
    pad_cols = dim_obs_p - dim_obs_in
    if pad_rows or pad_cols:
        obs = jnp.pad(obs, ((0, pad_rows), (0, pad_cols)))

    flops = 2 * B_pad * (dim_obs_p * HID1_PAD + HID1_PAD * HID2 + HID2 * act_pad)
    weight_bytes = 2 * (dim_obs_p * HID1_PAD + HID1_PAD * HID2 + HID2 * act_pad)
    bias_bytes = 4 * (HID1_PAD + HID2 + act_pad)
    io_bytes = 4 * B_pad * (dim_obs_p + act_pad)
    cost = pl.CostEstimate(
        flops=flops,
        transcendentals=B_pad * act_pad,
        bytes_accessed=weight_bytes + bias_bytes + io_bytes,
    )

    def build(use_pipeline_modes):
        def spec(shape, index_map, buffers):
            if use_pipeline_modes and buffers is not None:
                return pl.BlockSpec(shape, index_map, pipeline_mode=pl.Buffered(buffers))
            return pl.BlockSpec(shape, index_map)

        obs_spec = spec((TB, dim_obs_p), lambda i: (i, 0), 3)   # deep input pipeline
        out_spec = pl.BlockSpec((TB, act_pad), lambda i: (i, 0))
        resident = lambda shape: spec(shape, lambda i: (0, 0), 1)  # DMA'd once, no 2x buf

        return pl.pallas_call(
            actor_kernel,
            out_shape=jax.ShapeDtypeStruct((B_pad, act_pad), jnp.float32),
            grid_spec=pltpu.PrefetchScalarGridSpec(
                num_scalar_prefetch=0,
                grid=(nb,),
                in_specs=[
                    obs_spec,
                    resident(w1.shape), resident(b1.shape),
                    resident(w2.shape), resident(b2.shape),
                    resident(w3.shape), resident(b3.shape),
                ],
                out_specs=out_spec,
            ),
            compiler_params=pltpu.CompilerParams(
                dimension_semantics=("parallel",),
                vmem_limit_bytes=vmem_limit,
            ),
            cost_estimate=cost,
        )

    try:
        out_padded = build(True)(obs, w1, b1, w2, b2, w3, b3)
    except Exception:
        # Older jax without BlockSpec(pipeline_mode=...) support: plain double-buffering.
        out_padded = build(False)(obs, w1, b1, w2, b2, w3, b3)

    return out_padded[:B, :dim_action]


def init_params(key, dim_observation, dim_action):
    """Deterministic synthetic f32 parameters matching ActorNet.__init__ shapes."""
    ks = jax.random.split(key, 6)

    def lin(kw, kb, fan_in, fan_out):
        # uniform(-1/sqrt(fan_in), 1/sqrt(fan_in)), like torch.nn.Linear defaults
        bound = 1.0 / jnp.sqrt(jnp.float32(fan_in))
        w = jax.random.uniform(kw, (fan_in, fan_out), jnp.float32, -bound, bound)
        b = jax.random.uniform(kb, (1, fan_out), jnp.float32, -bound, bound)
        return w, b

    w1, b1 = lin(ks[0], ks[1], dim_observation, HID1)
    w2, b2 = lin(ks[2], ks[3], HID1, HID2)
    w3, b3 = lin(ks[4], ks[5], HID2, dim_action)
    return (w1, b1, w2, b2, w3, b3)


def prepare_params(params):
    """Pad feature dims to TPU-friendly sizes (all padding is mathematically exact)
    and cast weights to bf16 (f32 biases)."""
    w1, b1, w2, b2, w3, b3 = params
    dim_obs = w1.shape[0]
    dim_action = w3.shape[1]

    # HID1 500 -> 512: zero output cols of FC1 (ReLU -> 0) and zero contraction rows of FC2.
    pad_h = HID1_PAD - w1.shape[1]
    w1 = jnp.pad(w1, ((0, 0), (0, pad_h)))
    b1 = jnp.pad(b1, ((0, 0), (0, pad_h)))
    w2 = jnp.pad(w2, ((0, pad_h), (0, 0)))

    # Lane-dense output: pad dim_action up to a multiple of 128; padded cols give
    # exactly tanh(0) = 0 and are sliced off by the wrapper.
    pad_a = _round_up(dim_action, LANE) - dim_action
    w3 = jnp.pad(w3, ((0, 0), (0, pad_a)))
    b3 = jnp.pad(b3, ((0, 0), (0, pad_a)))

    # Only pad FC1's contraction dim when dim_obs is large and ragged; for tiny
    # dim_obs the extra obs columns would inflate the dominant input DMA.
    if dim_obs >= 256 and dim_obs % LANE != 0:
        pad_o = _round_up(dim_obs, LANE) - dim_obs
        w1 = jnp.pad(w1, ((0, pad_o), (0, 0)))

    return (
        w1.astype(jnp.bfloat16), b1.astype(jnp.float32),
        w2.astype(jnp.bfloat16), b2.astype(jnp.float32),
        w3.astype(jnp.bfloat16), b3.astype(jnp.float32),
    )


def reference_forward_f32(obs, params):
    """Pure-f32 reference matching the PyTorch module."""
    w1, b1, w2, b2, w3, b3 = params
    h1 = jnp.maximum(obs @ w1 + b1, 0.0)
    h2 = jnp.maximum(h1 @ w2 + b2, 0.0)
    return jnp.tanh(h2 @ w3 + b3)


def reference_forward_bf16(obs, prepared_params, dim_action):
    """Reference with the same bf16-operand / f32-accumulate arithmetic as the kernel."""
    w1, b1, w2, b2, w3, b3 = prepared_params
    pad_cols = w1.shape[0] - obs.shape[1]
    if pad_cols:
        obs = jnp.pad(obs, ((0, 0), (0, pad_cols)))
    x = obs.astype(jnp.bfloat16)
    h1 = jnp.maximum(jnp.dot(x, w1, preferred_element_type=jnp.float32) + b1, 0.0)
    h2 = jnp.maximum(
        jnp.dot(h1.astype(jnp.bfloat16), w2, preferred_element_type=jnp.float32) + b2, 0.0)
    out = jnp.tanh(
        jnp.dot(h2.astype(jnp.bfloat16), w3, preferred_element_type=jnp.float32) + b3)
    return out[:, :dim_action]


if __name__ == "__main__":
    key = jax.random.PRNGKey(0)
    k_obs, k_par = jax.random.split(key)

    batch = 2
    dim_observation = 16
    dim_action = 8

    obs = jax.random.normal(k_obs, (batch, dim_observation), jnp.float32)
    params = init_params(k_par, dim_observation, dim_action)
    prepared = prepare_params(params)

    out = actor_forward(obs, prepared, dim_action)
    out = jax.block_until_ready(out)

    assert out.shape == (batch, dim_action)
    # Exact-arithmetic check against a reference using the same bf16/f32 mixed precision.
    ref_bf16 = reference_forward_bf16(obs, prepared, dim_action)
    assert jnp.allclose(out, ref_bf16, atol=1e-3, rtol=1e-3), "mismatch vs bf16 reference"
    # Sanity check against the full-f32 PyTorch-equivalent reference.
    # (bf16 operands deviate from pure f32 by up to ~5e-2; keep a pure-f32 path if the
    #  policy is sensitive near tanh saturation.)
    ref_f32 = reference_forward_f32(obs, params)
    assert jnp.allclose(out, ref_f32, atol=5e-2, rtol=5e-2), "mismatch vs f32 reference"
    assert bool(jnp.all(jnp.abs(out) <= 1.0))

    print("KERNEL_OK")
</pallas_src>

<mosaic_0001>
module attributes {stable_mosaic.version = 11 : i64} {
  func.func @actor_kernel(%arg0: i32, %arg1: memref<16x16xf32, #tpu.memory_space<vmem>>, %arg2: memref<16x512xbf16, #tpu.memory_space<vmem>>, %arg3: memref<1x512xf32, #tpu.memory_space<vmem>>, %arg4: memref<512x128xbf16, #tpu.memory_space<vmem>>, %arg5: memref<1x128xf32, #tpu.memory_space<vmem>>, %arg6: memref<128x128xbf16, #tpu.memory_space<vmem>>, %arg7: memref<1x128xf32, #tpu.memory_space<vmem>>, %arg8: memref<16x128xf32, #tpu.memory_space<vmem>>) attributes {dimension_semantics = [#tpu.dimension_semantics<parallel>], iteration_bounds = array<i64: 1>, scalar_prefetch = 0 : i64, scratch_operands = 0 : i64, tpu.core_type = #tpu.core_type<tc>, window_params = [{transform_indices = @transform_0, window_bounds = array<i64: 16, 16>}, {pipeline_mode = #tpu.pipeline_mode<synchronous>, transform_indices = @transform_1, window_bounds = array<i64: 16, 512>}, {pipeline_mode = #tpu.pipeline_mode<synchronous>, transform_indices = @transform_2, window_bounds = array<i64: 1, 512>}, {pipeline_mode = #tpu.pipeline_mode<synchronous>, transform_indices = @transform_3, window_bounds = array<i64: 512, 128>}, {pipeline_mode = #tpu.pipeline_mode<synchronous>, transform_indices = @transform_4, window_bounds = array<i64: 1, 128>}, {pipeline_mode = #tpu.pipeline_mode<synchronous>, transform_indices = @transform_5, window_bounds = array<i64: 128, 128>}, {pipeline_mode = #tpu.pipeline_mode<synchronous>, transform_indices = @transform_6, window_bounds = array<i64: 1, 128>}, {transform_indices = @transform_7, window_bounds = array<i64: 16, 128>}]} {
    %c0 = arith.constant 0 : index
    %c0_0 = arith.constant 0 : index
    %0 = vector.load %arg1[%c0, %c0_0] : memref<16x16xf32, #tpu.memory_space<vmem>>, vector<16x16xf32>
    %1 = arith.truncf %0 : vector<16x16xf32> to vector<16x16xbf16>
    %c0_1 = arith.constant 0 : index
    %c0_2 = arith.constant 0 : index
    %2 = vector.load %arg2[%c0_1, %c0_2] : memref<16x512xbf16, #tpu.memory_space<vmem>>, vector<16x512xbf16>
    %cst = arith.constant dense<0.000000e+00> : vector<16x512xf32>
    %3 = tpu.matmul %1, %2, %cst {dimension_numbers = #tpu.dot_dimension_numbers<[1], [0], [0], [1], [0, 0, 1, 1], [], []>} : vector<16x16xbf16>, vector<16x512xbf16>, vector<16x512xf32> -> vector<16x512xf32>
    %c0_3 = arith.constant 0 : index
    %c0_4 = arith.constant 0 : index
    %4 = vector.load %arg3[%c0_3, %c0_4] : memref<1x512xf32, #tpu.memory_space<vmem>>, vector<1x512xf32>
    %5 = vector.broadcast %4 : vector<1x512xf32> to vector<16x512xf32>
    %6 = arith.addf %3, %5 : vector<16x512xf32>
    %cst_5 = arith.constant 0.000000e+00 : f32
    %7 = vector.broadcast %cst_5 : f32 to vector<16x512xf32>
    %8 = arith.maximumf %6, %7 : vector<16x512xf32>
    %9 = arith.truncf %8 : vector<16x512xf32> to vector<16x512xbf16>
    %c0_6 = arith.constant 0 : index
    %c0_7 = arith.constant 0 : index
    %10 = vector.load %arg4[%c0_6, %c0_7] : memref<512x128xbf16, #tpu.memory_space<vmem>>, vector<512x128xbf16>
    %cst_8 = arith.constant dense<0.000000e+00> : vector<16x128xf32>
    %11 = tpu.matmul %9, %10, %cst_8 {dimension_numbers = #tpu.dot_dimension_numbers<[1], [0], [0], [1], [0, 0, 1, 1], [], []>} : vector<16x512xbf16>, vector<512x128xbf16>, vector<16x128xf32> -> vector<16x128xf32>
    %c0_9 = arith.constant 0 : index
    %c0_10 = arith.constant 0 : index
    %12 = vector.load %arg5[%c0_9, %c0_10] : memref<1x128xf32, #tpu.memory_space<vmem>>, vector<1x128xf32>
    %13 = vector.broadcast %12 : vector<1x128xf32> to vector<16x128xf32>
    %14 = arith.addf %11, %13 : vector<16x128xf32>
    %cst_11 = arith.constant 0.000000e+00 : f32
    %15 = vector.broadcast %cst_11 : f32 to vector<16x128xf32>
    %16 = arith.maximumf %14, %15 : vector<16x128xf32>
    %17 = arith.truncf %16 : vector<16x128xf32> to vector<16x128xbf16>
    %c0_12 = arith.constant 0 : index
    %c0_13 = arith.constant 0 : index
    %18 = vector.load %arg6[%c0_12, %c0_13] : memref<128x128xbf16, #tpu.memory_space<vmem>>, vector<128x128xbf16>
    %cst_14 = arith.constant dense<0.000000e+00> : vector<16x128xf32>
    %19 = tpu.matmul %17, %18, %cst_14 {dimension_numbers = #tpu.dot_dimension_numbers<[1], [0], [0], [1], [0, 0, 1, 1], [], []>} : vector<16x128xbf16>, vector<128x128xbf16>, vector<16x128xf32> -> vector<16x128xf32>
    %c0_15 = arith.constant 0 : index
    %c0_16 = arith.constant 0 : index
    %20 = vector.load %arg7[%c0_15, %c0_16] : memref<1x128xf32, #tpu.memory_space<vmem>>, vector<1x128xf32>
    %21 = vector.broadcast %20 : vector<1x128xf32> to vector<16x128xf32>
    %22 = arith.addf %19, %21 : vector<16x128xf32>
    %23 = math.tanh %22 : vector<16x128xf32>
    %c0_17 = arith.constant 0 : index
    %c0_18 = arith.constant 0 : index
    %24 = vector.load %arg8[%c0_17, %c0_18] : memref<16x128xf32, #tpu.memory_space<vmem>>, vector<16x128xf32>
    tpu.vector_store %arg8[%c0_17, %c0_18], %23 {strides = array<i32>} : memref<16x128xf32, #tpu.memory_space<vmem>>, vector<16x128xf32>,
    return
  }
  func.func @transform_0(%arg0: i32) -> (i32, i32) {
    %c0_i32 = arith.constant 0 : i32
    %c0_i32_0 = arith.constant 0 : i32
    return %arg0, %c0_i32 : i32, i32
  }
  func.func @transform_1(%arg0: i32) -> (i32, i32) {
    %c0_i32 = arith.constant 0 : i32
    %c0_i32_0 = arith.constant 0 : i32
    %c0_i32_1 = arith.constant 0 : i32
    return %c0_i32, %c0_i32_0 : i32, i32
  }
  func.func @transform_2(%arg0: i32) -> (i32, i32) {
    %c0_i32 = arith.constant 0 : i32
    %c0_i32_0 = arith.constant 0 : i32
    %c0_i32_1 = arith.constant 0 : i32
    return %c0_i32, %c0_i32_0 : i32, i32
  }
  func.func @transform_3(%arg0: i32) -> (i32, i32) {
    %c0_i32 = arith.constant 0 : i32
    %c0_i32_0 = arith.constant 0 : i32
    %c0_i32_1 = arith.constant 0 : i32
    return %c0_i32, %c0_i32_0 : i32, i32
  }
  func.func @transform_4(%arg0: i32) -> (i32, i32) {
    %c0_i32 = arith.constant 0 : i32
    %c0_i32_0 = arith.constant 0 : i32
    %c0_i32_1 = arith.constant 0 : i32
    return %c0_i32, %c0_i32_0 : i32, i32
  }
  func.func @transform_5(%arg0: i32) -> (i32, i32) {
    %c0_i32 = arith.constant 0 : i32
    %c0_i32_0 = arith.constant 0 : i32
    %c0_i32_1 = arith.constant 0 : i32
    return %c0_i32, %c0_i32_0 : i32, i32
  }
  func.func @transform_6(%arg0: i32) -> (i32, i32) {
    %c0_i32 = arith.constant 0 : i32
    %c0_i32_0 = arith.constant 0 : i32
    %c0_i32_1 = arith.constant 0 : i32
    return %c0_i32, %c0_i32_0 : i32, i32
  }
  func.func @transform_7(%arg0: i32) -> (i32, i32) {
    %c0_i32 = arith.constant 0 : i32
    %c0_i32_0 = arith.constant 0 : i32
    return %arg0, %c0_i32 : i32, i32
  }
}

</mosaic_0001>

<llo_original>
// kernel: tpu_custom_call.1
$region0: #{tpu_custom_call.1}
  #allocation0 [shape = 'u32[]', space=smem, size = 0x4, offset = 0x4, fixed_abs, tag = 'smem constant byte address 0x4 - core index']
  #allocation1 [shape = 'u32[144,128]{1,0:T(1,128)}', space=vmem, size = 0x12000, scoped, tag = 'internal scratch']
  %s0 = inlined_call_operand.hbm [shape: f32[16,16], index: 0, kind: input, shape index: {}]
  %s1 = inlined_call_operand.hbm [shape: bf16[16,512], index: 1, kind: input, shape index: {}]
  %s2 = inlined_call_operand.vmem [shape: f32[1,512], index: 2, kind: input, shape index: {}]
  %s3 = inlined_call_operand.hbm [shape: bf16[512,128], index: 3, kind: input, shape index: {}]
  %s4 = inlined_call_operand.vmem [shape: f32[1,128], index: 4, kind: input, shape index: {}]
  %s5 = inlined_call_operand.hbm [shape: bf16[128,128], index: 5, kind: input, shape index: {}]
  %s6 = inlined_call_operand.vmem [shape: f32[1,128], index: 6, kind: input, shape index: {}]
  %s7 = inlined_call_operand.hbm [shape: f32[16,128], index: 7, kind: output, shape index: {}]
  %s8 = sld [smem:[#allocation0]]
  $region54: #{tpu_custom_call.1} parent=0
    _
  %s10 = ssub.s32 1, %s8
  %s11 = scalar_select 0, %s10, %s8
  $region1: #{tpu_custom_call.1} parent=0
    #allocation2 [shape = 'u8[8192]{0}', space=vmem, size = 0x2000, scoped, tag = 'input window, operand 0, single buffered']
    #allocation3 [shape = 's32[1]{0}', space=sflag, size = 0x4, scoped, tag = 'scoped memory for tpu_custom_call.1']
    #allocation4 [shape = 's32[1]{0}', space=sflag, size = 0x4, scoped, tag = 'scoped memory for tpu_custom_call.1']
    #allocation5 [shape = 'u8[16384]{0}', space=vmem, size = 0x4000, scoped, tag = 'input window, operand 1, single buffered']
    #allocation6 [shape = 's32[1]{0}', space=sflag, size = 0x4, scoped, tag = 'scoped memory for tpu_custom_call.1']
    #allocation7 [shape = 'u8[131072]{0}', space=vmem, size = 0x20000, scoped, tag = 'input window, operand 3, single buffered']
    #allocation8 [shape = 'u8[32768]{0}', space=vmem, size = 0x8000, scoped, tag = 'input window, operand 5, single buffered']
    #allocation9 [shape = 's32[1]{0}', space=sflag, size = 0x4, scoped, tag = 'scoped memory for tpu_custom_call.1']
    #allocation10 [shape = 'u8[8192]{0}', space=vmem, size = 0x2000, scoped, tag = 'output window, operand 0, single buffered']
    %12 = vsyncpa [#allocation3], 0
    %13 = vsyncpa [#allocation6], 0
    %14 = vsyncpa [#allocation9], 0
    %15 = vsyncpa [#allocation4], 0
    // Predicated region
    $region2: #{tpu_custom_call.1} parent=1 // pred_check
      _
    $region3: #{tpu_custom_call.1} parent=1 // pred_check_branch
      %17 = sbr.rel (0) target = $region5
    $region4: #{tpu_custom_call.1} parent=1 // pred_region
      %s19 = ssub.s32 256, 256
      %20 = vsyncadd [#allocation3], %s19
      %s21 = sshll.u32 [#allocation2], 4
      %s22 = int_to_ptr.vmem [resolvable:$true] %s21
      %27 = dma.hbm_to_vmem [thread:$0]  %s0, 256, %s22, [#allocation3], 128, 128, 8
    $region5: #{tpu_custom_call.1} parent=1 // pred_fallthru
      _
    // Predicated region
    $region6: #{tpu_custom_call.1} parent=1 // pred_check
      _
    $region7: #{tpu_custom_call.1} parent=1 // pred_check_branch
      %29 = sbr.rel (0) target = $region9
    $region8: #{tpu_custom_call.1} parent=1 // pred_region
      %s31 = ssub.s32 512, 512
      %32 = vsyncadd [#allocation6], %s31
      %s33 = sshll.u32 [#allocation5], 4
      %s34 = int_to_ptr.vmem [resolvable:$true] %s33
      %39 = dma.hbm_to_vmem [thread:$0]  %s1, 512, %s34, [#allocation6], 256, 256, 16
    $region9: #{tpu_custom_call.1} parent=1 // pred_fallthru
      _
    // Predicated region
    $region10: #{tpu_custom_call.1} parent=1 // pred_check
      _
    $region11: #{tpu_custom_call.1} parent=1 // pred_check_branch
      %41 = sbr.rel (0) target = $region13
    $region12: #{tpu_custom_call.1} parent=1 // pred_region
      _
    $region13: #{tpu_custom_call.1} parent=1 // pred_fallthru
      _
    // Predicated region
    $region14: #{tpu_custom_call.1} parent=1 // pred_check
      _
    $region15: #{tpu_custom_call.1} parent=1 // pred_check_branch
      %43 = sbr.rel (0) target = $region17
    $region16: #{tpu_custom_call.1} parent=1 // pred_region
      %s45 = ssub.s32 4096, 4096
      %46 = vsyncadd [#allocation6], %s45
      %s47 = sshll.u32 [#allocation7], 4
      %s48 = int_to_ptr.vmem [resolvable:$true] %s47
      %53 = dma.hbm_to_vmem [thread:$0]  %s3, 4096, %s48, [#allocation6], 64, 64, 4
    $region17: #{tpu_custom_call.1} parent=1 // pred_fallthru
      _
    // Predicated region
    $region18: #{tpu_custom_call.1} parent=1 // pred_check
      _
    $region19: #{tpu_custom_call.1} parent=1 // pred_check_branch
      %55 = sbr.rel (0) target = $region21
    $region20: #{tpu_custom_call.1} parent=1 // pred_region
      _
    $region21: #{tpu_custom_call.1} parent=1 // pred_fallthru
      _
    // Predicated region
    $region22: #{tpu_custom_call.1} parent=1 // pred_check
      _
    $region23: #{tpu_custom_call.1} parent=1 // pred_check_branch
      %57 = sbr.rel (0) target = $region25
    $region24: #{tpu_custom_call.1} parent=1 // pred_region
      %s59 = ssub.s32 1024, 1024
      %60 = vsyncadd [#allocation9], %s59
      %s61 = sshll.u32 [#allocation8], 4
      %s62 = int_to_ptr.vmem [resolvable:$true] %s61
      %67 = dma.hbm_to_vmem [thread:$0]  %s5, 1024, %s62, [#allocation9], 64, 64, 4
    $region25: #{tpu_custom_call.1} parent=1 // pred_fallthru
      _
    // Predicated region
    $region26: #{tpu_custom_call.1} parent=1 // pred_check
      _
    $region27: #{tpu_custom_call.1} parent=1 // pred_check_branch
      %69 = sbr.rel (0) target = $region29
    $region28: #{tpu_custom_call.1} parent=1 // pred_region
      _
    $region29: #{tpu_custom_call.1} parent=1 // pred_fallthru
      _
    // Predicated region
    $region30: #{tpu_custom_call.1} parent=1 // pred_check
      _
    $region31: #{tpu_custom_call.1} parent=1 // pred_check_branch
      %71 = sbr.rel (0) target = $region33
    $region32: #{tpu_custom_call.1} parent=1 // pred_region
      %72 = dma.done [#allocation3], 256
    $region33: #{tpu_custom_call.1} parent=1 // pred_fallthru
      _
    // Predicated region
    $region34: #{tpu_custom_call.1} parent=1 // pred_check
      _
    $region35: #{tpu_custom_call.1} parent=1 // pred_check_branch
      %74 = sbr.rel (0) target = $region37
    $region36: #{tpu_custom_call.1} parent=1 // pred_region
      %75 = dma.done [#allocation6], 512
    $region37: #{tpu_custom_call.1} parent=1 // pred_fallthru
      _
    // Predicated region
    $region38: #{tpu_custom_call.1} parent=1 // pred_check
      _
    $region39: #{tpu_custom_call.1} parent=1 // pred_check_branch
      %77 = sbr.rel (0) target = $region41
    $region40: #{tpu_custom_call.1} parent=1 // pred_region
      %78 = dma.done [#allocation6], 4096
    $region41: #{tpu_custom_call.1} parent=1 // pred_fallthru
      _
    // Predicated region
    $region42: #{tpu_custom_call.1} parent=1 // pred_check
      _
    $region43: #{tpu_custom_call.1} parent=1 // pred_check_branch
      %80 = sbr.rel (0) target = $region45
    $region44: #{tpu_custom_call.1} parent=1 // pred_region
      %81 = dma.done [#allocation9], 1024
    $region45: #{tpu_custom_call.1} parent=1 // pred_fallthru
      _
    %v83 = vld [vmem:[#allocation2] sm:$0xff]
    %v84 = vld [vmem:[#allocation2 + $0x8] sm:$0xff]
    %v85 = vpack.c.bf16 %v84, %v83
    %v86 = vld [vmem:[#allocation5] sm:$0xff]
    %v87 = vld [vmem:[#allocation5 + $0x8] sm:$0xff]
    %v88 = vld [vmem:[#allocation5 + $0x10] sm:$0xff]
    %v89 = vld [vmem:[#allocation5 + $0x18] sm:$0xff]
    %v90 = vld [vmem:[%s2] sm:$0xf]
    %v92 = vlaneseq
    %v93 = vshrl.u32 %v92, 7
    %v94 = vsub.s32 0, %v93
    %v95 = vrot.slane %v90, %v94
    %v96 = vlaneseq
    %v97 = vshrl.u32 %v96, 7
    %v98 = vsub.s32 1, %v97
    %v99 = vrot.slane %v90, %v98
    %v100 = vlaneseq
    %v101 = vshrl.u32 %v100, 7
    %v102 = vsub.s32 2, %v101
    %v103 = vrot.slane %v90, %v102
    %v104 = vlaneseq
    %v105 = vshrl.u32 %v104, 7
    %v106 = vsub.s32 3, %v105
    %v107 = vrot.slane %v90, %v106
    %v116 = vunpack.c.l.b16 %v86
    %v117 = vunpack.c.h.b16 %v86
    %v118 = vunpack.c.l.b16 %v87
    %v119 = vunpack.c.h.b16 %v87
    %v120 = vunpack.c.l.b16 %v88
    %v121 = vunpack.c.h.b16 %v88
    %v122 = vunpack.c.l.b16 %v89
    %v123 = vunpack.c.h.b16 %v89
    %v124 = vpack.c.b16 %v120, %v116
    %v125 = vpack.c.b16 %v121, %v117
    %v126 = vpack.c.b16 %v122, %v118
    %v127 = vpack.c.b16 %v123, %v119
    %vm132 = vcmask 130048
    %v134 = vsel %vm132, %v85, 0
    %136 = vmatprep.subr.bf16.mxu0 %v125
    %137 = vmatpush1.bf16.msra.mxu0 %v124
    %138 = vmatprep.subr.bf16.mxu0 0
    %139 = vmatpush1.bf16.msra.mxu0 0
    %140 = vmatprep.subr.bf16.mxu0 0
    %141 = vmatpush1.bf16.msra.mxu0 0
    %142 = vmatprep.subr.bf16.mxu0 0
    %143 = vmatpush1.bf16.msra.mxu0 0
    %144 = vmatprep.subr.bf16.mxu0 0
    %145 = vmatpush1.bf16.msra.mxu0 0
    %146 = vmatprep.subr.bf16.mxu0 0
    %147 = vmatpush1.bf16.msra.mxu0 0
    %148 = vmatprep.subr.bf16.mxu0 0
    %149 = vmatpush1.bf16.msra.mxu0 0
    %150 = vmatprep.subr.bf16.mxu0 0
    %151 = vmatpush1.bf16.msra.mxu0 0
    %152 = vmatprep.subr.bf16.mxu0 0
    %153 = vmatpush1.bf16.msra.mxu0 0
    %154 = vmatprep.subr.bf16.mxu0 0
    %155 = vmatpush1.bf16.msra.mxu0 0
    %156 = vmatprep.subr.bf16.mxu0 0
    %157 = vmatpush1.bf16.msra.mxu0 0
    %158 = vmatprep.subr.bf16.mxu0 0
    %159 = vmatpush1.bf16.msra.mxu0 0
    %160 = vmatprep.subr.bf16.mxu0 0
    %161 = vmatpush1.bf16.msra.mxu0 0
    %162 = vmatprep.subr.bf16.mxu0 0
    %163 = vmatpush1.bf16.msra.mxu0 0
    %164 = vmatprep.subr.bf16.mxu0 0
    %165 = vmatpush1.bf16.msra.mxu0 0
    %166 = vmatprep.subr.bf16.mxu0 0
    %167 = vmatpush1.bf16.msra.mxu0 0
    %168 = vmatprep.mubr.bf16.mxu0 0
    %169 = vmatmul.mubr.bf16.gmra.mrb[0].mxu0 %v134
    %v170 = vpop.f32.mrb[0].mxu0
    %v171 = vadd.f32 %v95, %v170
    %v172 = vpop.f32.mrb[0].mxu0
    %v173 = vadd.f32 %v99, %v172
    %v174 = vpop.f32.mrb[0].mxu0
    %v175 = vadd.f32 %v95, %v174
    %v176 = vpop.f32.mrb[0].mxu0
    %v177 = vadd.f32 %v99, %v176
    %178 = vdwg.mxu0
    %179 = vmatprep.subr.bf16.mxu0 %v127
    %180 = vmatpush1.bf16.msra.mxu0 %v126
    %181 = vmatprep.subr.bf16.mxu0 0
    %182 = vmatpush1.bf16.msra.mxu0 0
    %183 = vmatprep.subr.bf16.mxu0 0
    %184 = vmatpush1.bf16.msra.mxu0 0
    %185 = vmatprep.subr.bf16.mxu0 0
    %186 = vmatpush1.bf16.msra.mxu0 0
    %187 = vmatprep.subr.bf16.mxu0 0
    %188 = vmatpush1.bf16.msra.mxu0 0
    %189 = vmatprep.subr.bf16.mxu0 0
    %190 = vmatpush1.bf16.msra.mxu0 0
    %191 = vmatprep.subr.bf16.mxu0 0
    %192 = vmatpush1.bf16.msra.mxu0 0
    %193 = vmatprep.subr.bf16.mxu0 0
    %194 = vmatpush1.bf16.msra.mxu0 0
    %195 = vmatprep.subr.bf16.mxu0 0
    %196 = vmatpush1.bf16.msra.mxu0 0
    %197 = vmatprep.subr.bf16.mxu0 0
    %198 = vmatpush1.bf16.msra.mxu0 0
    %199 = vmatprep.subr.bf16.mxu0 0
    %200 = vmatpush1.bf16.msra.mxu0 0
    %201 = vmatprep.subr.bf16.mxu0 0
    %202 = vmatpush1.bf16.msra.mxu0 0
    %203 = vmatprep.subr.bf16.mxu0 0
    %204 = vmatpush1.bf16.msra.mxu0 0
    %205 = vmatprep.subr.bf16.mxu0 0
    %206 = vmatpush1.bf16.msra.mxu0 0
    %207 = vmatprep.subr.bf16.mxu0 0
    %208 = vmatpush1.bf16.msra.mxu0 0
    %209 = vmatprep.subr.bf16.mxu0 0
    %210 = vmatpush1.bf16.msra.mxu0 0
    %211 = vmatprep.mubr.bf16.mxu0 0
    %212 = vmatmul.mubr.bf16.gmra.mrb[0].mxu0 %v134
    %v213 = vpop.f32.mrb[0].mxu0
    %v214 = vadd.f32 %v103, %v213
    %v215 = vpop.f32.mrb[0].mxu0
    %v216 = vadd.f32 %v107, %v215
    %v217 = vpop.f32.mrb[0].mxu0
    %v218 = vadd.f32 %v103, %v217
    %v219 = vpop.f32.mrb[0].mxu0
    %v220 = vadd.f32 %v107, %v219
    %221 = vdwg.mxu0
    %v222 = vmax.f32 %v171, 0.0
    %v223 = vmax.f32 %v173, 0.0
    %v224 = vmax.f32 %v214, 0.0
    %v225 = vmax.f32 %v216, 0.0
    %v226 = vmax.f32 %v175, 0.0
    %v227 = vmax.f32 %v177, 0.0
    %v228 = vmax.f32 %v218, 0.0
    %v229 = vmax.f32 %v220, 0.0
    %v230 = vpack.c.bf16 %v226, %v222
    %v231 = vpack.c.bf16 %v227, %v223
    %v232 = vpack.c.bf16 %v228, %v224
    %v233 = vpack.c.bf16 %v229, %v225
    %v234 = vld [vmem:[#allocation7] sm:$0xf]
    %v235 = vld [vmem:[#allocation7 + $0x4] sm:$0xf]
    %v236 = vld [vmem:[#allocation7 + $0x8] sm:$0xf]
    %v237 = vld [vmem:[#allocation7 + $0xc] sm:$0xf]
    %v238 = vld [vmem:[#allocation7 + $0x10] sm:$0xf]
    %v239 = vld [vmem:[#allocation7 + $0x14] sm:$0xf]
    %v240 = vld [vmem:[#allocation7 + $0x18] sm:$0xf]
    %v241 = vld [vmem:[#allocation7 + $0x1c] sm:$0xf]
    %v242 = vld [vmem:[#allocation7 + $0x20] sm:$0xf]
    %v243 = vld [vmem:[#allocation7 + $0x24] sm:$0xf]
    %v244 = vld [vmem:[#allocation7 + $0x28] sm:$0xf]
    %v245 = vld [vmem:[#allocation7 + $0x2c] sm:$0xf]
    %v246 = vld [vmem:[#allocation7 + $0x30] sm:$0xf]
    %v247 = vld [vmem:[#allocation7 + $0x34] sm:$0xf]
    %v248 = vld [vmem:[#allocation7 + $0x38] sm:$0xf]
    %v249 = vld [vmem:[#allocation7 + $0x3c] sm:$0xf]
    %v250 = vld [vmem:[#allocation7 + $0x40] sm:$0xf]
    %v251 = vld [vmem:[#allocation7 + $0x44] sm:$0xf]
    %v252 = vld [vmem:[#allocation7 + $0x48] sm:$0xf]
    %v253 = vld [vmem:[#allocation7 + $0x4c] sm:$0xf]
    %v254 = vld [vmem:[#allocation7 + $0x50] sm:$0xf]
    %v255 = vld [vmem:[#allocation7 + $0x54] sm:$0xf]
    %v256 = vld [vmem:[#allocation7 + $0x58] sm:$0xf]
    %v257 = vld [vmem:[#allocation7 + $0x5c] sm:$0xf]
    %v258 = vld [vmem:[#allocation7 + $0x60] sm:$0xf]
    %v259 = vld [vmem:[#allocation7 + $0x64] sm:$0xf]
    %v260 = vld [vmem:[#allocation7 + $0x68] sm:$0xf]
    %v261 = vld [vmem:[#allocation7 + $0x6c] sm:$0xf]
    %v262 = vld [vmem:[#allocation7 + $0x70] sm:$0xf]
    %v263 = vld [vmem:[#allocation7 + $0x74] sm:$0xf]
    %v264 = vld [vmem:[#allocation7 + $0x78] sm:$0xf]
    %v265 = vld [vmem:[#allocation7 + $0x7c] sm:$0xf]
    %v266 = vld [vmem:[#allocation7 + $0x80] sm:$0xf]
    %v267 = vld [vmem:[#allocation7 + $0x84] sm:$0xf]
    %v268 = vld [vmem:[#allocation7 + $0x88] sm:$0xf]
    %v269 = vld [vmem:[#allocation7 + $0x8c] sm:$0xf]
    %v270 = vld [vmem:[#allocation7 + $0x90] sm:$0xf]
    %v271 = vld [vmem:[#allocation7 + $0x94] sm:$0xf]
    %v272 = vld [vmem:[#allocation7 + $0x98] sm:$0xf]
    %v273 = vld [vmem:[#allocation7 + $0x9c] sm:$0xf]
    %v274 = vld [vmem:[#allocation7 + $0xa0] sm:$0xf]
    %v275 = vld [vmem:[#allocation7 + $0xa4] sm:$0xf]
    %v276 = vld [vmem:[#allocation7 + $0xa8] sm:$0xf]
    %v277 = vld [vmem:[#allocation7 + $0xac] sm:$0xf]
    %v278 = vld [vmem:[#allocation7 + $0xb0] sm:$0xf]
    %v279 = vld [vmem:[#allocation7 + $0xb4] sm:$0xf]
    %v280 = vld [vmem:[#allocation7 + $0xb8] sm:$0xf]
    %v281 = vld [vmem:[#allocation7 + $0xbc] sm:$0xf]
    %v282 = vld [vmem:[#allocation7 + $0xc0] sm:$0xf]
    %v283 = vld [vmem:[#allocation7 + $0xc4] sm:$0xf]
    %v284 = vld [vmem:[#allocation7 + $0xc8] sm:$0xf]
    %v285 = vld [vmem:[#allocation7 + $0xcc] sm:$0xf]
    %v286 = vld [vmem:[#allocation7 + $0xd0] sm:$0xf]
    %v287 = vld [vmem:[#allocation7 + $0xd4] sm:$0xf]
    %v288 = vld [vmem:[#allocation7 + $0xd8] sm:$0xf]
    %v289 = vld [vmem:[#allocation7 + $0xdc] sm:$0xf]
    %v290 = vld [vmem:[#allocation7 + $0xe0] sm:$0xf]
    %v291 = vld [vmem:[#allocation7 + $0xe4] sm:$0xf]
    %v292 = vld [vmem:[#allocation7 + $0xe8] sm:$0xf]
    %v293 = vld [vmem:[#allocation7 + $0xec] sm:$0xf]
    %v294 = vld [vmem:[#allocation7 + $0xf0] sm:$0xf]
    %v295 = vld [vmem:[#allocation7 + $0xf4] sm:$0xf]
    %v296 = vld [vmem:[#allocation7 + $0xf8] sm:$0xf]
    %v297 = vld [vmem:[#allocation7 + $0xfc] sm:$0xf]
    %v298 = vld [vmem:[%s4] sm:$0x1]
    %v300 = vlaneseq
    %v301 = vshrl.u32 %v300, 7
    %v302 = vsub.s32 0, %v301
    %v303 = vrot.slane %v298, %v302
    %v369 = vunpack.c.l.b16 %v234
    %v370 = vunpack.c.l.b16 %v235
    %v371 = vunpack.c.l.b16 %v236
    %v372 = vunpack.c.l.b16 %v237
    %v373 = vunpack.c.l.b16 %v238
    %v374 = vunpack.c.l.b16 %v239
    %v375 = vunpack.c.l.b16 %v240
    %v376 = vunpack.c.l.b16 %v241
    %v377 = vunpack.c.l.b16 %v242
    %v378 = vunpack.c.l.b16 %v243
    %v379 = vunpack.c.l.b16 %v244
    %v380 = vunpack.c.l.b16 %v245
    %v381 = vunpack.c.l.b16 %v246
    %v382 = vunpack.c.l.b16 %v247
    %v383 = vunpack.c.l.b16 %v248
    %v384 = vunpack.c.l.b16 %v249
    %v385 = vunpack.c.l.b16 %v250
    %v386 = vunpack.c.l.b16 %v251
    %v387 = vunpack.c.l.b16 %v252
    %v388 = vunpack.c.l.b16 %v253
    %v389 = vunpack.c.l.b16 %v254
    %v390 = vunpack.c.l.b16 %v255
    %v391 = vunpack.c.l.b16 %v256
    %v392 = vunpack.c.l.b16 %v257
    %v393 = vunpack.c.l.b16 %v258
    %v394 = vunpack.c.l.b16 %v259
    %v395 = vunpack.c.l.b16 %v260
    %v396 = vunpack.c.l.b16 %v261
    %v397 = vunpack.c.l.b16 %v262
    %v398 = vunpack.c.l.b16 %v263
    %v399 = vunpack.c.l.b16 %v264
    %v400 = vunpack.c.l.b16 %v265
    %v401 = vunpack.c.l.b16 %v266
    %v402 = vunpack.c.l.b16 %v267
    %v403 = vunpack.c.l.b16 %v268
    %v404 = vunpack.c.l.b16 %v269
    %v405 = vunpack.c.l.b16 %v270
    %v406 = vunpack.c.l.b16 %v271
    %v407 = vunpack.c.l.b16 %v272
    %v408 = vunpack.c.l.b16 %v273
    %v409 = vunpack.c.l.b16 %v274
    %v410 = vunpack.c.l.b16 %v275
    %v411 = vunpack.c.l.b16 %v276
    %v412 = vunpack.c.l.b16 %v277
    %v413 = vunpack.c.l.b16 %v278
    %v414 = vunpack.c.l.b16 %v279
    %v415 = vunpack.c.l.b16 %v280
    %v416 = vunpack.c.l.b16 %v281
    %v417 = vunpack.c.l.b16 %v282
    %v418 = vunpack.c.l.b16 %v283
    %v419 = vunpack.c.l.b16 %v284
    %v420 = vunpack.c.l.b16 %v285
    %v421 = vunpack.c.l.b16 %v286
    %v422 = vunpack.c.l.b16 %v287
    %v423 = vunpack.c.l.b16 %v288
    %v424 = vunpack.c.l.b16 %v289
    %v425 = vunpack.c.l.b16 %v290
    %v426 = vunpack.c.l.b16 %v291
    %v427 = vunpack.c.l.b16 %v292
    %v428 = vunpack.c.l.b16 %v293
    %v429 = vunpack.c.l.b16 %v294
    %v430 = vunpack.c.l.b16 %v295
    %v431 = vunpack.c.l.b16 %v296
    %v432 = vunpack.c.l.b16 %v297
    %v433 = vpack.c.b16 %v370, %v369
    %v434 = vpack.c.b16 %v372, %v371
    %v435 = vpack.c.b16 %v374, %v373
    %v436 = vpack.c.b16 %v376, %v375
    %v437 = vpack.c.b16 %v378, %v377
    %v438 = vpack.c.b16 %v380, %v379
    %v439 = vpack.c.b16 %v382, %v381
    %v440 = vpack.c.b16 %v384, %v383
    %v441 = vpack.c.b16 %v386, %v385
    %v442 = vpack.c.b16 %v388, %v387
    %v443 = vpack.c.b16 %v390, %v389
    %v444 = vpack.c.b16 %v392, %v391
    %v445 = vpack.c.b16 %v394, %v393
    %v446 = vpack.c.b16 %v396, %v395
    %v447 = vpack.c.b16 %v398, %v397
    %v448 = vpack.c.b16 %v400, %v399
    %v449 = vpack.c.b16 %v402, %v401
    %v450 = vpack.c.b16 %v404, %v403
    %v451 = vpack.c.b16 %v406, %v405
    %v452 = vpack.c.b16 %v408, %v407
    %v453 = vpack.c.b16 %v410, %v409
    %v454 = vpack.c.b16 %v412, %v411
    %v455 = vpack.c.b16 %v414, %v413
    %v456 = vpack.c.b16 %v416, %v415
    %v457 = vpack.c.b16 %v418, %v417
    %v458 = vpack.c.b16 %v420, %v419
    %v459 = vpack.c.b16 %v422, %v421
    %v460 = vpack.c.b16 %v424, %v423
    %v461 = vpack.c.b16 %v426, %v425
    %v462 = vpack.c.b16 %v428, %v427
    %v463 = vpack.c.b16 %v430, %v429
    %v464 = vpack.c.b16 %v432, %v431
    %497 = vmatprep.subr.bf16.mxu0 0
    %498 = vmatpush1.bf16.msra.mxu0 %v433
    %499 = vmatprep.subr.bf16.mxu0 0
    %500 = vmatpush1.bf16.msra.mxu0 %v434
    %501 = vmatprep.subr.bf16.mxu0 0
    %502 = vmatpush1.bf16.msra.mxu0 %v435
    %503 = vmatprep.subr.bf16.mxu0 0
    %504 = vmatpush1.bf16.msra.mxu0 %v436
    %505 = vmatprep.subr.bf16.mxu0 0
    %506 = vmatpush1.bf16.msra.mxu0 %v437
    %507 = vmatprep.subr.bf16.mxu0 0
    %508 = vmatpush1.bf16.msra.mxu0 %v438
    %509 = vmatprep.subr.bf16.mxu0 0
    %510 = vmatpush1.bf16.msra.mxu0 %v439
    %511 = vmatprep.subr.bf16.mxu0 0
    %512 = vmatpush1.bf16.msra.mxu0 %v440
    %513 = vmatprep.subr.bf16.mxu0 0
    %514 = vmatpush1.bf16.msra.mxu0 %v441
    %515 = vmatprep.subr.bf16.mxu0 0
    %516 = vmatpush1.bf16.msra.mxu0 %v442
    %517 = vmatprep.subr.bf16.mxu0 0
    %518 = vmatpush1.bf16.msra.mxu0 %v443
    %519 = vmatprep.subr.bf16.mxu0 0
    %520 = vmatpush1.bf16.msra.mxu0 %v444
    %521 = vmatprep.subr.bf16.mxu0 0
    %522 = vmatpush1.bf16.msra.mxu0 %v445
    %523 = vmatprep.subr.bf16.mxu0 0
    %524 = vmatpush1.bf16.msra.mxu0 %v446
    %525 = vmatprep.subr.bf16.mxu0 0
    %526 = vmatpush1.bf16.msra.mxu0 %v447
    %527 = vmatprep.subr.bf16.mxu0 0
    %528 = vmatpush1.bf16.msra.mxu0 %v448
    %529 = vmatprep.mubr.bf16.mxu0 %v231
    %530 = vmatmul.mubr.bf16.gmra.mrb[0].mxu0 %v230
    %v531 = vpop.f32.mrb[0].mxu0
    %v532 = vadd.f32 %v303, %v531
    %v533 = vpop.f32.mrb[0].mxu0
    %v534 = vpop.f32.mrb[0].mxu0
    %v535 = vadd.f32 %v303, %v534
    %v536 = vpop.f32.mrb[0].mxu0
    %537 = vdwg.mxu0
    %538 = vmatprep.subr.bf16.mxu0 0
    %539 = vmatpush1.bf16.msra.mxu0 %v449
    %540 = vmatprep.subr.bf16.mxu0 0
    %541 = vmatpush1.bf16.msra.mxu0 %v450
    %542 = vmatprep.subr.bf16.mxu0 0
    %543 = vmatpush1.bf16.msra.mxu0 %v451
    %544 = vmatprep.subr.bf16.mxu0 0
    %545 = vmatpush1.bf16.msra.mxu0 %v452
    %546 = vmatprep.subr.bf16.mxu0 0
    %547 = vmatpush1.bf16.msra.mxu0 %v453
    %548 = vmatprep.subr.bf16.mxu0 0
    %549 = vmatpush1.bf16.msra.mxu0 %v454
    %550 = vmatprep.subr.bf16.mxu0 0
    %551 = vmatpush1.bf16.msra.mxu0 %v455
    %552 = vmatprep.subr.bf16.mxu0 0
    %553 = vmatpush1.bf16.msra.mxu0 %v456
    %554 = vmatprep.subr.bf16.mxu0 0
    %555 = vmatpush1.bf16.msra.mxu0 %v457
    %556 = vmatprep.subr.bf16.mxu0 0
    %557 = vmatpush1.bf16.msra.mxu0 %v458
    %558 = vmatprep.subr.bf16.mxu0 0
    %559 = vmatpush1.bf16.msra.mxu0 %v459
    %560 = vmatprep.subr.bf16.mxu0 0
    %561 = vmatpush1.bf16.msra.mxu0 %v460
    %562 = vmatprep.subr.bf16.mxu0 0
    %563 = vmatpush1.bf16.msra.mxu0 %v461
    %564 = vmatprep.subr.bf16.mxu0 0
    %565 = vmatpush1.bf16.msra.mxu0 %v462
    %566 = vmatprep.subr.bf16.mxu0 0
    %567 = vmatpush1.bf16.msra.mxu0 %v463
    %568 = vmatprep.subr.bf16.mxu0 0
    %569 = vmatpush1.bf16.msra.mxu0 %v464
    %570 = vmatprep.mubr.bf16.mxu0 %v233
    %571 = vmatmul.mubr.bf16.gmra.mrb[0].mxu0 %v232
    %v572 = vpop.f32.mrb[0].mxu0
    %v573 = vadd.f32 %v532, %v572
    %v574 = vpop.f32.mrb[0].mxu0
    %v575 = vpop.f32.mrb[0].mxu0
    %v576 = vadd.f32 %v535, %v575
    %v577 = vpop.f32.mrb[0].mxu0
    %578 = vdwg.mxu0
    %v579 = vmax.f32 %v573, 0.0
    %v580 = vmax.f32 %v576, 0.0
    %v581 = vpack.c.bf16 %v580, %v579
    %v582 = vld [vmem:[#allocation8] sm:$0xf]
    %v583 = vld [vmem:[#allocation8 + $0x4] sm:$0xf]
    %v584 = vld [vmem:[#allocation8 + $0x8] sm:$0xf]
    %v585 = vld [vmem:[#allocation8 + $0xc] sm:$0xf]
    %v586 = vld [vmem:[#allocation8 + $0x10] sm:$0xf]
    %v587 = vld [vmem:[#allocation8 + $0x14] sm:$0xf]
    %v588 = vld [vmem:[#allocation8 + $0x18] sm:$0xf]
    %v589 = vld [vmem:[#allocation8 + $0x1c] sm:$0xf]
    %v590 = vld [vmem:[#allocation8 + $0x20] sm:$0xf]
    %v591 = vld [vmem:[#allocation8 + $0x24] sm:$0xf]
    %v592 = vld [vmem:[#allocation8 + $0x28] sm:$0xf]
    %v593 = vld [vmem:[#allocation8 + $0x2c] sm:$0xf]
    %v594 = vld [vmem:[#allocation8 + $0x30] sm:$0xf]
    %v595 = vld [vmem:[#allocation8 + $0x34] sm:$0xf]
    %v596 = vld [vmem:[#allocation8 + $0x38] sm:$0xf]
    %v597 = vld [vmem:[#allocation8 + $0x3c] sm:$0xf]
    %v598 = vld [vmem:[%s6] sm:$0x1]
    %v600 = vlaneseq
    %v601 = vshrl.u32 %v600, 7
    %v602 = vsub.s32 0, %v601
    %v603 = vrot.slane %v598, %v602
    %v621 = vunpack.c.l.b16 %v582
    %v622 = vunpack.c.l.b16 %v583
    %v623 = vunpack.c.l.b16 %v584
    %v624 = vunpack.c.l.b16 %v585
    %v625 = vunpack.c.l.b16 %v586
    %v626 = vunpack.c.l.b16 %v587
    %v627 = vunpack.c.l.b16 %v588
    %v628 = vunpack.c.l.b16 %v589
    %v629 = vunpack.c.l.b16 %v590
    %v630 = vunpack.c.l.b16 %v591
    %v631 = vunpack.c.l.b16 %v592
    %v632 = vunpack.c.l.b16 %v593
    %v633 = vunpack.c.l.b16 %v594
    %v634 = vunpack.c.l.b16 %v595
    %v635 = vunpack.c.l.b16 %v596
    %v636 = vunpack.c.l.b16 %v597
    %v637 = vpack.c.b16 %v622, %v621
    %v638 = vpack.c.b16 %v624, %v623
    %v639 = vpack.c.b16 %v626, %v625
    %v640 = vpack.c.b16 %v628, %v627
    %v641 = vpack.c.b16 %v630, %v629
    %v642 = vpack.c.b16 %v632, %v631
    %v643 = vpack.c.b16 %v634, %v633
    %v644 = vpack.c.b16 %v636, %v635
    %653 = vmatprep.subr.bf16.mxu0 0
    %654 = vmatpush1.bf16.msra.mxu0 %v637
    %655 = vmatprep.subr.bf16.mxu0 0
    %656 = vmatpush1.bf16.msra.mxu0 %v638
    %657 = vmatprep.subr.bf16.mxu0 0
    %658 = vmatpush1.bf16.msra.mxu0 %v639
    %659 = vmatprep.subr.bf16.mxu0 0
    %660 = vmatpush1.bf16.msra.mxu0 %v640
    %661 = vmatprep.subr.bf16.mxu0 0
    %662 = vmatpush1.bf16.msra.mxu0 %v641
    %663 = vmatprep.subr.bf16.mxu0 0
    %664 = vmatpush1.bf16.msra.mxu0 %v642
    %665 = vmatprep.subr.bf16.mxu0 0
    %666 = vmatpush1.bf16.msra.mxu0 %v643
    %667 = vmatprep.subr.bf16.mxu0 0
    %668 = vmatpush1.bf16.msra.mxu0 %v644
    %669 = vmatprep.subr.bf16.mxu0 0
    %670 = vmatpush1.bf16.msra.mxu0 0
    %671 = vmatprep.subr.bf16.mxu0 0
    %672 = vmatpush1.bf16.msra.mxu0 0
    %673 = vmatprep.subr.bf16.mxu0 0
    %674 = vmatpush1.bf16.msra.mxu0 0
    %675 = vmatprep.subr.bf16.mxu0 0
    %676 = vmatpush1.bf16.msra.mxu0 0
    %677 = vmatprep.subr.bf16.mxu0 0
    %678 = vmatpush1.bf16.msra.mxu0 0
    %679 = vmatprep.subr.bf16.mxu0 0
    %680 = vmatpush1.bf16.msra.mxu0 0
    %681 = vmatprep.subr.bf16.mxu0 0
    %682 = vmatpush1.bf16.msra.mxu0 0
    %683 = vmatprep.subr.bf16.mxu0 0
    %684 = vmatpush1.bf16.msra.mxu0 0
    %685 = vmatprep.mubr.bf16.mxu0 0
    %686 = vmatmul.mubr.bf16.gmra.mrb[0].mxu0 %v581
    %v687 = vpop.f32.mrb[0].mxu0
    %v688 = vadd.f32 %v603, %v687
    %v689 = vpop.f32.mrb[0].mxu0
    %v690 = vpop.f32.mrb[0].mxu0
    %v691 = vadd.f32 %v603, %v690
    %v692 = vpop.f32.mrb[0].mxu0
    %693 = vdwg.mxu0
    %v694 = vtanh.pop %v688
    %v695 = vtanh.pop %v691
    %696 = vst [vmem:[#allocation10] sm:$0xff] %v694
    %697 = vst [vmem:[#allocation10 + $0x8] sm:$0xff] %v695
    // Predicated region
    $region46: #{tpu_custom_call.1} parent=1 // pred_check
      _
    $region47: #{tpu_custom_call.1} parent=1 // pred_check_branch
      %699 = sbr.rel (0) target = $region49
    $region48: #{tpu_custom_call.1} parent=1 // pred_region
      %s701 = ssub.s32 256, 256
      %702 = vsyncadd [#allocation4], %s701
      %s703 = sshll.u32 [#allocation10], 4
      %s704 = int_to_ptr.vmem [resolvable:$true] %s703
      %709 = dma.vmem_to_hbm [thread:$0]  %s704, 256, %s7, [#allocation4], 128, 128, 8
    $region49: #{tpu_custom_call.1} parent=1 // pred_fallthru
      _
    // Predicated region
    $region50: #{tpu_custom_call.1} parent=1 // pred_check
      _
    $region51: #{tpu_custom_call.1} parent=1 // pred_check_branch
      %711 = sbr.rel (0) target = $region53
    $region52: #{tpu_custom_call.1} parent=1 // pred_region
      %712 = dma.done [#allocation4], 256
    $region53: #{tpu_custom_call.1} parent=1 // pred_fallthru
      _
    %713 = vsyncpa [#allocation3], 1
    %714 = vsyncpa [#allocation6], 1
    %715 = vsyncpa [#allocation9], 1
    %716 = vsyncpa [#allocation4], 1

</llo_original>
